<compile_context>
chip_gen: v7x
topology: tpu7x:2x2x1
jax: 0.10.0
libtpu: 0.0.40
codegen_flags: <defaults>
</compile_context>

<pallas_src>
import functools

import jax
import jax.numpy as jnp
import numpy as np
from jax import lax
from jax.experimental import pallas as pl
from jax.experimental.pallas import tpu as pltpu


# ----------------------------------------------------------------------------
# Positional-encoding table (init-time buffer, same as the PyTorch module)
# ----------------------------------------------------------------------------
def build_pos_enc(max_len, d_model):
    """Sin/cos table identical to PositionalAgentEncoding.build_pos_enc.

    Returns [max_len, d_model]; the PyTorch buffer is [max_len, 1, d_model] —
    the singleton axis is reintroduced by broadcasting inside the kernel.
    NOTE: assumes even d_model (same interleave limitation as the reference).
    """
    position = jnp.arange(max_len, dtype=jnp.float32)[:, None]
    div_term = jnp.exp(jnp.arange(0, d_model, 2, dtype=jnp.float32)
                       * (-np.log(10000.0) / d_model))
    pe_sin = jnp.sin(position * div_term)
    pe_cos = jnp.cos(position * div_term)
    # interleave: pe[:, 0::2] = sin, pe[:, 1::2] = cos
    return jnp.stack([pe_sin, pe_cos], axis=-1).reshape(max_len, d_model)


# ----------------------------------------------------------------------------
# Portable counter-based hash (lowbias32) — pure uint32 VPU ops, lowers on TPU
# Mosaic AND in interpret mode (unlike the hardware PRNG primitives).
# ----------------------------------------------------------------------------
def _hash_u32(v):
    v = v ^ (v >> jnp.uint32(16))
    v = v * jnp.uint32(0x7FEB352D)
    v = v ^ (v >> jnp.uint32(15))
    v = v * jnp.uint32(0x846CA68B)
    v = v ^ (v >> jnp.uint32(16))
    return v


# ----------------------------------------------------------------------------
# Fused kernel: x + PE (broadcast over agents/batch) [+ dropout]
# ----------------------------------------------------------------------------
def _pe_add_kernel(x_ref, pe_ref, o_ref, *, tt, row_stride, d_total,
                   keep_thresh, inv_keep, seed_mix):
    # x_ref : [TT, TR, D]        (rows = agents*batch on sublanes, D on lanes)
    # pe_ref: [num_t_pad, 1, D]  resident across the whole grid (constant index_map)
    ti = pl.program_id(0)
    ri = pl.program_id(1)

    t0 = pl.multiple_of(ti * tt, tt)
    pe_blk = pe_ref[pl.ds(t0, tt), :, :]              # [TT, 1, D], f32

    # Broadcast over the row axis == repeat_interleave(num_a) without materializing.
    # Compute in f32 (PyTorch's pe buffer is fp32), cast only at the store.
    y = x_ref[...].astype(jnp.float32) + pe_blk

    if keep_thresh is not None:                        # static (trace-time) branch
        shp = y.shape
        tr = shp[1]
        t_g = lax.broadcasted_iota(jnp.uint32, shp, 0) + (ti * tt).astype(jnp.uint32)
        r_g = lax.broadcasted_iota(jnp.uint32, shp, 1) + (ri * tr).astype(jnp.uint32)
        d_g = lax.broadcasted_iota(jnp.uint32, shp, 2)
        lin = (t_g * jnp.uint32(row_stride) + r_g) * jnp.uint32(d_total) + d_g
        bits = _hash_u32(_hash_u32(lin) ^ jnp.uint32(seed_mix))
        # integer threshold compare — no int->float convert, no float compare
        keep = bits >= jnp.uint32(keep_thresh)
        y = jnp.where(keep, y * jnp.float32(inv_keep), jnp.float32(0.0))

    o_ref[...] = y.astype(o_ref.dtype)


def _vmem_capacity_bytes():
    try:
        return int(pltpu.get_tpu_info().vmem_capacity_bytes)
    except Exception:
        return 64 << 20        # conservative (v7x per-TensorCore VMEM)


def positional_agent_encoding(x, pe, num_a, agent_enc_shuffle=None,
                              t_offset=0, a_offset=0, *,
                              dropout_p=0.0, training=False, seed=0,
                              donate_x=False):
    """Fused x + positional-encoding (+ optional dropout) in one pallas_call.

    x : [S, B(, ...), D] with S = num_t * num_a, row s = t*num_a + a.
    pe: [max_t_len, D] table from build_pos_enc.
    agent_enc_shuffle / a_offset are accepted for signature parity but unused,
    exactly like the reference forward (it never applies the agent encoding).
    """
    del agent_enc_shuffle, a_offset  # unused by the reference forward
    assert x.ndim >= 3, "expected x of shape [S, B(, ...), D]"
    S, D = x.shape[0], x.shape[-1]
    assert S % num_a == 0, "leading dim must be num_t * num_a"
    num_t = S // num_a
    assert t_offset + num_t <= pe.shape[0], "t_offset + num_t exceeds PE table"
    mid = int(np.prod(x.shape[1:-1]))             # batch (and any extra) dims
    R = num_a * mid
    itemsize = jnp.dtype(x.dtype).itemsize

    # ---- block-size selection: two-axis tiling, generation-aware VMEM budget ----
    vmem_cap = _vmem_capacity_bytes()
    total_budget = min(int(vmem_cap * 0.6), 40 << 20)   # all pipelined buffers
    block_budget = max(total_budget // 4, 1 << 20)      # 2x in + 2x out x-blocks

    sub = 8 * max(1, 4 // itemsize)                     # sublane quantum (f32:8, bf16:16)
    row_bytes = R * D * itemsize                        # one full time-row
    if num_t * row_bytes <= block_budget:
        TT, TR = num_t, R                               # whole array = one block
    elif row_bytes <= block_budget:
        TT, TR = max(1, block_budget // row_bytes), R   # tile time only
    else:
        TT = 1                                          # tile the agent*batch rows too
        TR = max(sub, (block_budget // (D * itemsize)) // sub * sub)
        TR = min(TR, R)
    grid_t = pl.cdiv(num_t, TT)
    grid_r = pl.cdiv(R, TR)
    # TODO(synk): if R is not a multiple of the sublane quantum, stores on the last
    # row-block are sublane-masked (correct but slower); pad R upstream for real shapes.

    # PE rows actually used, kept in f32 and resident for the whole grid.  Padded so
    # the in-kernel pl.ds never goes out of bounds on a partial last time-block.
    num_t_pad = grid_t * TT
    pe_slice = lax.slice_in_dim(pe, t_offset, t_offset + num_t, axis=0).astype(jnp.float32)
    if num_t_pad > num_t:
        pe_slice = jnp.pad(pe_slice, ((0, num_t_pad - num_t), (0, 0)))
    pe_slice = pe_slice[:, None, :]                     # [num_t_pad, 1, D]

    x3 = x.reshape(num_t, R, D)                         # contiguous view, free in XLA

    p = float(dropout_p) if training else 0.0           # eval mode: dropout = identity
    if p > 0.0:
        keep_thresh = min(int(round(p * (1 << 32))), (1 << 32) - 1)
        inv_keep = 1.0 / (1.0 - p)
        seed_mix = (int(seed) * 0x9E3779B9 + 0x85EBCA6B) & 0xFFFFFFFF
    else:
        keep_thresh, inv_keep, seed_mix = None, 1.0, 0

    kernel = functools.partial(_pe_add_kernel, tt=TT, row_stride=grid_r * TR,
                               d_total=D, keep_thresh=keep_thresh,
                               inv_keep=inv_keep, seed_mix=seed_mix)

    # Pipelined footprint: double-buffered x blocks + out blocks + resident PE.
    footprint = 4 * TT * TR * D * itemsize + 2 * num_t_pad * D * 4
    vmem_limit = int(min(max(footprint + (4 << 20), 16 << 20), 48 << 20))

    semantics = tuple("parallel" if g > 1 else "arbitrary" for g in (grid_t, grid_r))

    out = pl.pallas_call(
        kernel,
        out_shape=jax.ShapeDtypeStruct((num_t, R, D), x.dtype),
        grid=(grid_t, grid_r),
        in_specs=[pl.BlockSpec((TT, TR, D), lambda ti, ri: (ti, ri, 0)),
                  # PE: full-extent block, constant index_map -> DMA'd once, resident.
                  pl.BlockSpec((num_t_pad, 1, D), lambda ti, ri: (0, 0, 0))],
        out_specs=pl.BlockSpec((TT, TR, D), lambda ti, ri: (ti, ri, 0)),
        input_output_aliases=({0: 0} if donate_x else {}),
        compiler_params=pltpu.CompilerParams(
            dimension_semantics=semantics,
            vmem_limit_bytes=vmem_limit),
    )(x3, pe_slice)
    return out.reshape(x.shape)


# ----------------------------------------------------------------------------
if __name__ == "__main__":
    max_t_len = 200
    d_model = 128        # tf_model_dim — lane-dense feature dim
    num_a = 4            # agents
    num_t = 8            # time steps
    B = 2                # batch
    t_offset = 3
    S = num_t * num_a

    key = jax.random.PRNGKey(0)
    x = jax.random.normal(key, (S, B, d_model), jnp.float32)
    pe = build_pos_enc(max_t_len, d_model)

    # ---- inference path (dropout = identity, eval mode) ----
    y = positional_agent_encoding(x, pe, num_a, t_offset=t_offset)
    jax.block_until_ready(y)

    # pure-jnp reference of the PyTorch forward
    pe_rows = jnp.repeat(pe[t_offset:t_offset + num_t], num_a, axis=0)  # repeat_interleave
    ref = x + pe_rows[:, None, :]
    assert y.shape == x.shape
    assert bool(jnp.all(jnp.isfinite(y)))
    assert jnp.allclose(y, ref, atol=1e-6, rtol=1e-6), \
        float(jnp.max(jnp.abs(y - ref)))

    # ---- training path with fused in-kernel dropout (portable hash RNG) ----
    # TODO(synk): the dropout mask uses a counter-based hash, so it will not bit-match
    # torch's RNG stream; the keep-probability / scaling semantics match nn.Dropout.
    p_drop = 0.1
    y_drop = positional_agent_encoding(x, pe, num_a, t_offset=t_offset,
                                       dropout_p=p_drop, training=True, seed=42)
    jax.block_until_ready(y_drop)
    assert bool(jnp.all(jnp.isfinite(y_drop)))
    drop_frac = float(jnp.mean((y_drop == 0.0).astype(jnp.float32)))
    assert 0.02 < drop_frac < 0.30, drop_frac          # ~p_drop of elements zeroed
    kept = y_drop != 0.0                               # kept elems are scaled copies
    assert jnp.allclose(jnp.where(kept, y_drop, 0.0),
                        jnp.where(kept, y * (1.0 / (1.0 - p_drop)), 0.0),
                        atol=1e-5, rtol=1e-5)

    print("KERNEL_OK")
</pallas_src>

<mosaic_0001>
module attributes {stable_mosaic.version = 11 : i64} {
  func.func @_pe_add_kernel(%arg0: i32, %arg1: i32, %arg2: memref<8x8x128xf32, #tpu.memory_space<vmem>>, %arg3: memref<8x1x128xf32, #tpu.memory_space<vmem>>, %arg4: memref<8x8x128xf32, #tpu.memory_space<vmem>>) attributes {dimension_semantics = [#tpu.dimension_semantics<arbitrary>, #tpu.dimension_semantics<arbitrary>], iteration_bounds = array<i64: 1, 1>, scalar_prefetch = 0 : i64, scratch_operands = 0 : i64, tpu.core_type = #tpu.core_type<tc>, window_params = [{transform_indices = @transform_0, window_bounds = array<i64: 8, 8, 128>}, {pipeline_mode = #tpu.pipeline_mode<synchronous>, transform_indices = @transform_1, window_bounds = array<i64: 8, 1, 128>}, {transform_indices = @transform_2, window_bounds = array<i64: 8, 8, 128>}]} {
    %c8_i32 = arith.constant 8 : i32
    %0 = arith.muli %arg0, %c8_i32 : i32
    %1 = tpu.assume_multiple %0, 8 : i32
    %2 = arith.index_cast %1 : i32 to index
    %c0 = arith.constant 0 : index
    %c0_0 = arith.constant 0 : index
    %3 = vector.load %arg3[%2, %c0, %c0_0] : memref<8x1x128xf32, #tpu.memory_space<vmem>>, vector<8x1x128xf32>
    %c0_1 = arith.constant 0 : index
    %c0_2 = arith.constant 0 : index
    %c0_3 = arith.constant 0 : index
    %4 = vector.load %arg2[%c0_1, %c0_2, %c0_3] : memref<8x8x128xf32, #tpu.memory_space<vmem>>, vector<8x8x128xf32>
    %5 = vector.broadcast %3 : vector<8x1x128xf32> to vector<8x8x128xf32>
    %6 = arith.addf %4, %5 : vector<8x8x128xf32>
    %c0_4 = arith.constant 0 : index
    %c0_5 = arith.constant 0 : index
    %c0_6 = arith.constant 0 : index
    %7 = vector.load %arg4[%c0_4, %c0_5, %c0_6] : memref<8x8x128xf32, #tpu.memory_space<vmem>>, vector<8x8x128xf32>
    tpu.vector_store %arg4[%c0_4, %c0_5, %c0_6], %6 {strides = array<i32>} : memref<8x8x128xf32, #tpu.memory_space<vmem>>, vector<8x8x128xf32>,
    return
  }
  func.func @transform_0(%arg0: i32, %arg1: i32) -> (i32, i32, i32) {
    %c0_i32 = arith.constant 0 : i32
    %c0_i32_0 = arith.constant 0 : i32
    return %arg0, %arg1, %c0_i32 : i32, i32, i32
  }
  func.func @transform_1(%arg0: i32, %arg1: i32) -> (i32, i32, i32) {
    %c0_i32 = arith.constant 0 : i32
    %c0_i32_0 = arith.constant 0 : i32
    %c0_i32_1 = arith.constant 0 : i32
    %c0_i32_2 = arith.constant 0 : i32
    return %c0_i32, %c0_i32_0, %c0_i32_1 : i32, i32, i32
  }
  func.func @transform_2(%arg0: i32, %arg1: i32) -> (i32, i32, i32) {
    %c0_i32 = arith.constant 0 : i32
    %c0_i32_0 = arith.constant 0 : i32
    return %arg0, %arg1, %c0_i32 : i32, i32, i32
  }
}

</mosaic_0001>

<llo_original>
// kernel: tpu_custom_call.1
$region0: #{tpu_custom_call.1}
  #allocation0 [shape = 'u32[]', space=smem, size = 0x4, offset = 0x4, fixed_abs, tag = 'smem constant byte address 0x4 - core index']
  #allocation1 [shape = 'u32[144,128]{1,0:T(1,128)}', space=vmem, size = 0x12000, scoped, tag = 'internal scratch']
  %s0 = inlined_call_operand.hbm [shape: f32[8,8,128], index: 0, kind: input, shape index: {}]
  %s1 = inlined_call_operand.hbm [shape: f32[8,1,128], index: 1, kind: input, shape index: {}]
  %s2 = inlined_call_operand.hbm [shape: f32[8,8,128], index: 2, kind: output, shape index: {}]
  %s3 = sld [smem:[#allocation0]]
  $region26: #{tpu_custom_call.1} parent=0
    _
  %s5 = ssub.s32 1, %s3
  %s6 = scalar_select 0, %s5, %s3
  $region1: #{tpu_custom_call.1} parent=0
    #allocation2 [shape = 'u8[32768]{0}', space=vmem, size = 0x8000, scoped, tag = 'input window, operand 0, single buffered']
    #allocation3 [shape = 's32[1]{0}', space=sflag, size = 0x4, scoped, tag = 'scoped memory for tpu_custom_call.1']
    #allocation4 [shape = 's32[1]{0}', space=sflag, size = 0x4, scoped, tag = 'scoped memory for tpu_custom_call.1']
    #allocation5 [shape = 'u8[4096]{0}', space=vmem, size = 0x1000, scoped, tag = 'input window, operand 1, single buffered']
    #allocation6 [shape = 's32[1]{0}', space=sflag, size = 0x4, scoped, tag = 'scoped memory for tpu_custom_call.1']
    #allocation7 [shape = 'u8[32768]{0}', space=vmem, size = 0x8000, scoped, tag = 'output window, operand 0, single buffered']
    %7 = vsyncpa [#allocation3], 0
    %8 = vsyncpa [#allocation6], 0
    %9 = vsyncpa [#allocation4], 0
    // Predicated region
    $region2: #{tpu_custom_call.1} parent=1 // pred_check
      _
    $region3: #{tpu_custom_call.1} parent=1 // pred_check_branch
      %11 = sbr.rel (0) target = $region5
    $region4: #{tpu_custom_call.1} parent=1 // pred_region
      %s13 = ssub.s32 1024, 1024
      %14 = vsyncadd [#allocation3], %s13
      %s15 = sshll.u32 [#allocation2], 4
      %s16 = int_to_ptr.vmem [resolvable:$true] %s15
      %21 = dma.hbm_to_vmem [thread:$0]  %s0, 1024, %s16, [#allocation3], 128, 128, 8
    $region5: #{tpu_custom_call.1} parent=1 // pred_fallthru
      _
    // Predicated region
    $region6: #{tpu_custom_call.1} parent=1 // pred_check
      _
    $region7: #{tpu_custom_call.1} parent=1 // pred_check_branch
      %23 = sbr.rel (0) target = $region9
    $region8: #{tpu_custom_call.1} parent=1 // pred_region
      %s25 = ssub.s32 128, 128
      %26 = vsyncadd [#allocation6], %s25
      %s27 = sshll.u32 [#allocation5], 4
      %s28 = int_to_ptr.vmem [resolvable:$true] %s27
      %33 = dma.hbm_to_vmem [thread:$0]  %s1, 128, %s28, [#allocation6], 16, 16, 1
    $region9: #{tpu_custom_call.1} parent=1 // pred_fallthru
      _
    // Predicated region
    $region10: #{tpu_custom_call.1} parent=1 // pred_check
      _
    $region11: #{tpu_custom_call.1} parent=1 // pred_check_branch
      %35 = sbr.rel (0) target = $region13
    $region12: #{tpu_custom_call.1} parent=1 // pred_region
      %36 = dma.done [#allocation3], 1024
    $region13: #{tpu_custom_call.1} parent=1 // pred_fallthru
      _
    // Predicated region
    $region14: #{tpu_custom_call.1} parent=1 // pred_check
      _
    $region15: #{tpu_custom_call.1} parent=1 // pred_check_branch
      %38 = sbr.rel (0) target = $region17
    $region16: #{tpu_custom_call.1} parent=1 // pred_region
      %39 = dma.done [#allocation6], 128
    $region17: #{tpu_custom_call.1} parent=1 // pred_fallthru
      _
    %s40 = smul.u32 0, 8
    %s41 = scalar_lea.vmem [#allocation5], %s40
    %v42 = vld [vmem:[%s41] sm:$0x1]
    %v43 = vld [vmem:[%s41 + $0x1] sm:$0x1]
    %v44 = vld [vmem:[%s41 + $0x2] sm:$0x1]
    %v45 = vld [vmem:[%s41 + $0x3] sm:$0x1]
    %v46 = vld [vmem:[%s41 + $0x4] sm:$0x1]
    %v47 = vld [vmem:[%s41 + $0x5] sm:$0x1]
    %v48 = vld [vmem:[%s41 + $0x6] sm:$0x1]
    %v49 = vld [vmem:[%s41 + $0x7] sm:$0x1]
    %v50 = vld [vmem:[#allocation2] sm:$0xff]
    %v51 = vld [vmem:[#allocation2 + $0x8] sm:$0xff]
    %v52 = vld [vmem:[#allocation2 + $0x10] sm:$0xff]
    %v53 = vld [vmem:[#allocation2 + $0x18] sm:$0xff]
    %v54 = vld [vmem:[#allocation2 + $0x20] sm:$0xff]
    %v55 = vld [vmem:[#allocation2 + $0x28] sm:$0xff]
    %v56 = vld [vmem:[#allocation2 + $0x30] sm:$0xff]
    %v57 = vld [vmem:[#allocation2 + $0x38] sm:$0xff]
    %v66 = vlaneseq
    %v67 = vshrl.u32 %v66, 7
    %v68 = vsub.s32 0, %v67
    %v69 = vrot.slane %v42, %v68
    %v70 = vlaneseq
    %v71 = vshrl.u32 %v70, 7
    %v72 = vsub.s32 0, %v71
    %v73 = vrot.slane %v43, %v72
    %v74 = vlaneseq
    %v75 = vshrl.u32 %v74, 7
    %v76 = vsub.s32 0, %v75
    %v77 = vrot.slane %v44, %v76
    %v78 = vlaneseq
    %v79 = vshrl.u32 %v78, 7
    %v80 = vsub.s32 0, %v79
    %v81 = vrot.slane %v45, %v80
    %v82 = vlaneseq
    %v83 = vshrl.u32 %v82, 7
    %v84 = vsub.s32 0, %v83
    %v85 = vrot.slane %v46, %v84
    %v86 = vlaneseq
    %v87 = vshrl.u32 %v86, 7
    %v88 = vsub.s32 0, %v87
    %v89 = vrot.slane %v47, %v88
    %v90 = vlaneseq
    %v91 = vshrl.u32 %v90, 7
    %v92 = vsub.s32 0, %v91
    %v93 = vrot.slane %v48, %v92
    %v94 = vlaneseq
    %v95 = vshrl.u32 %v94, 7
    %v96 = vsub.s32 0, %v95
    %v97 = vrot.slane %v49, %v96
    %v106 = vadd.f32 %v50, %v69
    %v107 = vadd.f32 %v51, %v73
    %v108 = vadd.f32 %v52, %v77
    %v109 = vadd.f32 %v53, %v81
    %v110 = vadd.f32 %v54, %v85
    %v111 = vadd.f32 %v55, %v89
    %v112 = vadd.f32 %v56, %v93
    %v113 = vadd.f32 %v57, %v97
    %114 = vst [vmem:[#allocation7] sm:$0xff] %v106
    %115 = vst [vmem:[#allocation7 + $0x8] sm:$0xff] %v107
    %116 = vst [vmem:[#allocation7 + $0x10] sm:$0xff] %v108
    %117 = vst [vmem:[#allocation7 + $0x18] sm:$0xff] %v109
    %118 = vst [vmem:[#allocation7 + $0x20] sm:$0xff] %v110
    %119 = vst [vmem:[#allocation7 + $0x28] sm:$0xff] %v111
    %120 = vst [vmem:[#allocation7 + $0x30] sm:$0xff] %v112
    %121 = vst [vmem:[#allocation7 + $0x38] sm:$0xff] %v113
    // Predicated region
    $region18: #{tpu_custom_call.1} parent=1 // pred_check
      _
    $region19: #{tpu_custom_call.1} parent=1 // pred_check_branch
      %123 = sbr.rel (0) target = $region21
    $region20: #{tpu_custom_call.1} parent=1 // pred_region
      %s125 = ssub.s32 1024, 1024
      %126 = vsyncadd [#allocation4], %s125
      %s127 = sshll.u32 [#allocation7], 4
      %s128 = int_to_ptr.vmem [resolvable:$true] %s127
      %133 = dma.vmem_to_hbm [thread:$0]  %s128, 1024, %s2, [#allocation4], 128, 128, 8
    $region21: #{tpu_custom_call.1} parent=1 // pred_fallthru
      _
    // Predicated region
    $region22: #{tpu_custom_call.1} parent=1 // pred_check
      _
    $region23: #{tpu_custom_call.1} parent=1 // pred_check_branch
      %135 = sbr.rel (0) target = $region25
    $region24: #{tpu_custom_call.1} parent=1 // pred_region
      %136 = dma.done [#allocation4], 1024
    $region25: #{tpu_custom_call.1} parent=1 // pred_fallthru
      _
    %137 = vsyncpa [#allocation3], 1
    %138 = vsyncpa [#allocation6], 1
    %139 = vsyncpa [#allocation4], 1

</llo_original>
